<compile_context>
chip_gen: v7x
topology: tpu7x:2x2x1
jax: 0.10.0
libtpu: 0.0.40
codegen_flags: <defaults>
</compile_context>

<pallas_src>
import functools

import jax
import jax.numpy as jnp
from jax import lax
from jax.experimental import pallas as pl
from jax.experimental.pallas import tpu as pltpu

_SUBLANE = 8
_LANE = 128


def _mlp_kernel(x_ref, w1_ref, b1_ref, w2_ref, b2_ref, w3_ref, b3_ref, o_ref):
    """One batch tile of the fused MLP; all operands resident in VMEM.

    x_ref : (tb, D)   f32 or bf16       w1_ref: (D, H1)  bf16   b1_ref: (1, H1) f32
    w2_ref: (H1, H2)  bf16              b2_ref: (1, H2)  f32
    w3_ref: (1, H2)   bf16              b3_ref: (1, 1)   f32
    o_ref : (1, tb)   f32   (batch on lanes -> full-lane stores)
    """
    x = x_ref[...].astype(jnp.bfloat16)                       # no-op if already bf16

    # Layer 1: Linear(D, H1) + ReLU   (Dropout: identity at inference)
    h1 = jnp.dot(x, w1_ref[...], preferred_element_type=jnp.float32)
    h1 = jnp.maximum(h1 + b1_ref[...], 0.0)                   # (tb, H1) f32

    # Layer 2: Linear(H1, H2) + ReLU
    h2 = jnp.dot(h1.astype(jnp.bfloat16), w2_ref[...],
                 preferred_element_type=jnp.float32)
    h2 = jnp.maximum(h2 + b2_ref[...], 0.0)                   # (tb, H2) f32

    # Layer 3: Linear(H2, 1) + Sigmoid, contracted last-with-last so the h2
    # "transpose" is folded into the MXU feed and the result is lane-dense.
    logits = lax.dot_general(
        w3_ref[...], h2.astype(jnp.bfloat16),
        dimension_numbers=(((1,), (1,)), ((), ())),
        preferred_element_type=jnp.float32)                   # (1, tb)
    o_ref[...] = jax.nn.sigmoid(logits + b3_ref[...]).astype(o_ref.dtype)


@functools.lru_cache(maxsize=1)
def _vmem_capacity_bytes():
    """Physical VMEM per TensorCore; conservative (v7x-sized) fallback."""
    try:
        cap = int(pltpu.get_tpu_info().vmem_capacity_bytes)
        return min(max(cap, 64 * 2**20), 128 * 2**20)
    except Exception:
        return 64 * 2**20


def _per_row_vmem_bytes(D, H1, H2, x_itemsize):
    """Approximate VMEM bytes per batch row of a tile (incl. double-buffering)."""
    return (2 * D * x_itemsize     # x tile, double-buffered by the pipeline
            + 2 * D                # bf16 copy of x fed to the MXU
            + 6 * H1 + 6 * H2      # h1 / h2 in f32 + their bf16 MXU copies
            + 160)                 # lane-padded (1, tb) temporaries, out buffers, slack


def _choose_block_rows(B, D, H1, H2, x_itemsize, budget_bytes, max_rows):
    """Largest batch tile whose footprint fits the VMEM budget."""
    if B <= _SUBLANE:
        return B                                   # single block == full array dims
    tb = int(budget_bytes) // _per_row_vmem_bytes(D, H1, H2, x_itemsize)
    tb = max(_SUBLANE, min(tb, max_rows, B))
    if tb >= _LANE:
        tb = (tb // _LANE) * _LANE                 # lane-aligned (1, tb) output
    else:
        tb = (tb // _SUBLANE) * _SUBLANE
    return tb


@functools.partial(jax.jit, static_argnames=("max_block_rows",))
def trial_outcome_forward(x, w1, b1, w2, b2, w3, b3, *, max_block_rows=32768):
    """Fused MLP forward.

    x : (B, D) float32 or bfloat16.
    Weights in PyTorch (out, in) layout:
      w1 (H1, D), b1 (H1,), w2 (H2, H1), b2 (H2,), w3 (1, H2), b3 (1,).
    Returns (B, 1) float32 probabilities.
    """
    B, D = x.shape
    H1 = w1.shape[0]
    H2 = w2.shape[0]

    # One-time, tiny weight preparation (transpose to x @ W layout, bf16 MXU feeds).
    w1t = w1.T.astype(jnp.bfloat16)                # (D, H1)
    w2t = w2.T.astype(jnp.bfloat16)                # (H1, H2)
    w3r = w3.astype(jnp.bfloat16)                  # (1, H2)  (used via transposed contraction)
    b1r = b1.reshape(1, H1).astype(jnp.float32)
    b2r = b2.reshape(1, H2).astype(jnp.float32)
    b3r = b3.reshape(1, 1).astype(jnp.float32)

    # Generation-aware tile budget.
    cap = _vmem_capacity_bytes()
    big_vmem = cap >= 100 * 2**20                  # v5e / v6e (128 MiB)
    budget = (72 if big_vmem else 40) * 2**20
    vmem_limit = (112 if big_vmem else 56) * 2**20

    tb = _choose_block_rows(B, D, H1, H2, x.dtype.itemsize, budget, max_block_rows)
    nt = pl.cdiv(B, tb)

    w_bytes = (D * H1 + H1 * H2 + H2) * 2 + (H1 + H2 + 1) * 4
    cost = pl.CostEstimate(
        flops=2 * B * (D * H1 + H1 * H2 + H2),
        transcendentals=B,
        bytes_accessed=B * D * x.dtype.itemsize + w_bytes + B * 4,
    )

    def const_spec(a):
        return pl.BlockSpec(a.shape, lambda i: (0,) * a.ndim)   # VMEM-resident

    out = pl.pallas_call(
        _mlp_kernel,
        grid=(nt,),
        out_shape=jax.ShapeDtypeStruct((nt, 1, tb), jnp.float32),
        in_specs=[
            pl.BlockSpec((tb, D), lambda i: (i, 0)),   # x: tiled over batch (ragged last block masked)
            const_spec(w1t), const_spec(b1r),
            const_spec(w2t), const_spec(b2r),
            const_spec(w3r), const_spec(b3r),
        ],
        # Batch tile lands on lanes: full-lane stores; leading grid dim squeezed.
        out_specs=pl.BlockSpec((None, 1, tb), lambda i: (i, 0, 0)),
        compiler_params=pltpu.CompilerParams(
            dimension_semantics=("parallel",),
            vmem_limit_bytes=vmem_limit,
        ),
        cost_estimate=cost,
    )(x, w1t, b1r, w2t, b2r, w3r, b3r)

    # Free-ish layout plumbing on a (B,)-sized array: (nt, 1, tb) -> (B, 1).
    return out.reshape(nt * tb, 1)[:B]


def init_params(key, input_dim, hidden_dims=(128, 64)):
    """PyTorch-default Linear init, torch (out, in) layout:
    W, b ~ U(-1/sqrt(fan_in), 1/sqrt(fan_in))."""
    dims = [input_dim] + list(hidden_dims) + [1]
    params = []
    for i in range(len(dims) - 1):
        fan_in, fan_out = dims[i], dims[i + 1]
        key, kw, kb = jax.random.split(key, 3)
        bound = 1.0 / (fan_in ** 0.5)
        w = jax.random.uniform(kw, (fan_out, fan_in), jnp.float32, -bound, bound)
        b = jax.random.uniform(kb, (fan_out,), jnp.float32, -bound, bound)
        params.extend([w, b])
    return params


def reference_forward_f32(x, w1, b1, w2, b2, w3, b3):
    """Pure f32 reference (matches the torch eval-mode forward)."""
    h1 = jnp.maximum(x @ w1.T + b1[None, :], 0.0)
    h2 = jnp.maximum(h1 @ w2.T + b2[None, :], 0.0)
    return jax.nn.sigmoid(h2 @ w3.T + b3[None, :])


def reference_forward_bf16(x, w1, b1, w2, b2, w3, b3):
    """Reference mirroring the kernel numerics: bf16 MXU operands, f32 accum/epilogue."""
    f = lambda a: a.astype(jnp.bfloat16)
    h1 = jnp.maximum(
        jnp.dot(f(x), f(w1).T, preferred_element_type=jnp.float32) + b1[None, :], 0.0)
    h2 = jnp.maximum(
        jnp.dot(f(h1), f(w2).T, preferred_element_type=jnp.float32) + b2[None, :], 0.0)
    logits = jnp.dot(f(h2), f(w3).T, preferred_element_type=jnp.float32) + b3[None, :]
    return jax.nn.sigmoid(logits)


if __name__ == "__main__":
    key = jax.random.PRNGKey(0)
    B, D = 10, 32          # B=10 exercises the ragged (un-padded) last block path

    kx, kp = jax.random.split(key)
    x = jax.random.normal(kx, (B, D), dtype=jnp.float32)
    w1, b1, w2, b2, w3, b3 = init_params(kp, input_dim=D, hidden_dims=(128, 64))

    out = trial_outcome_forward(x, w1, b1, w2, b2, w3, b3)
    out = jax.block_until_ready(out)

    assert out.shape == (B, 1)
    assert bool(jnp.all(jnp.isfinite(out)))

    ref_bf16 = reference_forward_bf16(x, w1, b1, w2, b2, w3, b3)
    err_bf16 = float(jnp.max(jnp.abs(out - ref_bf16)))
    assert err_bf16 < 2e-3, f"mismatch vs bf16-matched reference: {err_bf16}"

    ref_f32 = reference_forward_f32(x, w1, b1, w2, b2, w3, b3)
    err_f32 = float(jnp.max(jnp.abs(out - ref_f32)))
    assert err_f32 < 5e-2, f"mismatch vs f32 reference: {err_f32}"

    print("KERNEL_OK")
</pallas_src>

<mosaic_0001>
module attributes {stable_mosaic.version = 11 : i64} {
  func.func @_mlp_kernel(%arg0: i32, %arg1: memref<8x32xf32, #tpu.memory_space<vmem>>, %arg2: memref<32x128xbf16, #tpu.memory_space<vmem>>, %arg3: memref<1x128xf32, #tpu.memory_space<vmem>>, %arg4: memref<128x64xbf16, #tpu.memory_space<vmem>>, %arg5: memref<1x64xf32, #tpu.memory_space<vmem>>, %arg6: memref<1x64xbf16, #tpu.memory_space<vmem>>, %arg7: memref<1x1xf32, #tpu.memory_space<vmem>>, %arg8: memref<1x1x8xf32, #tpu.memory_space<vmem>>) attributes {dimension_semantics = [#tpu.dimension_semantics<parallel>], iteration_bounds = array<i64: 2>, scalar_prefetch = 0 : i64, scratch_operands = 0 : i64, tpu.core_type = #tpu.core_type<tc>, window_params = [{transform_indices = @transform_0, window_bounds = array<i64: 8, 32>}, {pipeline_mode = #tpu.pipeline_mode<synchronous>, transform_indices = @transform_1, window_bounds = array<i64: 32, 128>}, {pipeline_mode = #tpu.pipeline_mode<synchronous>, transform_indices = @transform_2, window_bounds = array<i64: 1, 128>}, {pipeline_mode = #tpu.pipeline_mode<synchronous>, transform_indices = @transform_3, window_bounds = array<i64: 128, 64>}, {pipeline_mode = #tpu.pipeline_mode<synchronous>, transform_indices = @transform_4, window_bounds = array<i64: 1, 64>}, {pipeline_mode = #tpu.pipeline_mode<synchronous>, transform_indices = @transform_5, window_bounds = array<i64: 1, 64>}, {pipeline_mode = #tpu.pipeline_mode<synchronous>, transform_indices = @transform_6, window_bounds = array<i64: 1, 1>}, {transform_indices = @transform_7, window_bounds = array<i64: 1, 1, 8>}]} {
    %c0 = arith.constant 0 : index
    %c0_0 = arith.constant 0 : index
    %0 = vector.load %arg1[%c0, %c0_0] : memref<8x32xf32, #tpu.memory_space<vmem>>, vector<8x32xf32>
    %1 = arith.truncf %0 : vector<8x32xf32> to vector<8x32xbf16>
    %c0_1 = arith.constant 0 : index
    %c0_2 = arith.constant 0 : index
    %2 = vector.load %arg2[%c0_1, %c0_2] : memref<32x128xbf16, #tpu.memory_space<vmem>>, vector<32x128xbf16>
    %cst = arith.constant dense<0.000000e+00> : vector<8x128xf32>
    %3 = tpu.matmul %1, %2, %cst {dimension_numbers = #tpu.dot_dimension_numbers<[1], [0], [0], [1], [0, 0, 1, 1], [], []>} : vector<8x32xbf16>, vector<32x128xbf16>, vector<8x128xf32> -> vector<8x128xf32>
    %c0_3 = arith.constant 0 : index
    %c0_4 = arith.constant 0 : index
    %4 = vector.load %arg3[%c0_3, %c0_4] : memref<1x128xf32, #tpu.memory_space<vmem>>, vector<1x128xf32>
    %5 = vector.broadcast %4 : vector<1x128xf32> to vector<8x128xf32>
    %6 = arith.addf %3, %5 : vector<8x128xf32>
    %cst_5 = arith.constant 0.000000e+00 : f32
    %7 = vector.broadcast %cst_5 : f32 to vector<8x128xf32>
    %8 = arith.maximumf %6, %7 : vector<8x128xf32>
    %9 = arith.truncf %8 : vector<8x128xf32> to vector<8x128xbf16>
    %c0_6 = arith.constant 0 : index
    %c0_7 = arith.constant 0 : index
    %10 = vector.load %arg4[%c0_6, %c0_7] : memref<128x64xbf16, #tpu.memory_space<vmem>>, vector<128x64xbf16>
    %cst_8 = arith.constant dense<0.000000e+00> : vector<8x64xf32>
    %11 = tpu.matmul %9, %10, %cst_8 {dimension_numbers = #tpu.dot_dimension_numbers<[1], [0], [0], [1], [0, 0, 1, 1], [], []>} : vector<8x128xbf16>, vector<128x64xbf16>, vector<8x64xf32> -> vector<8x64xf32>
    %c0_9 = arith.constant 0 : index
    %c0_10 = arith.constant 0 : index
    %12 = vector.load %arg5[%c0_9, %c0_10] : memref<1x64xf32, #tpu.memory_space<vmem>>, vector<1x64xf32>
    %13 = vector.broadcast %12 : vector<1x64xf32> to vector<8x64xf32>
    %14 = arith.addf %11, %13 : vector<8x64xf32>
    %cst_11 = arith.constant 0.000000e+00 : f32
    %15 = vector.broadcast %cst_11 : f32 to vector<8x64xf32>
    %16 = arith.maximumf %14, %15 : vector<8x64xf32>
    %c0_12 = arith.constant 0 : index
    %c0_13 = arith.constant 0 : index
    %17 = vector.load %arg6[%c0_12, %c0_13] : memref<1x64xbf16, #tpu.memory_space<vmem>>, vector<1x64xbf16>
    %18 = arith.truncf %16 : vector<8x64xf32> to vector<8x64xbf16>
    %cst_14 = arith.constant dense<0.000000e+00> : vector<1x8xf32>
    %19 = tpu.matmul %17, %18, %cst_14 {dimension_numbers = #tpu.dot_dimension_numbers<[1], [1], [0], [0], [0, 0, 1, 0], [], []>} : vector<1x64xbf16>, vector<8x64xbf16>, vector<1x8xf32> -> vector<1x8xf32>
    %c0_15 = arith.constant 0 : index
    %c0_16 = arith.constant 0 : index
    %20 = vector.load %arg7[%c0_15, %c0_16] : memref<1x1xf32, #tpu.memory_space<vmem>>, vector<1x1xf32>
    %21 = vector.broadcast %20 : vector<1x1xf32> to vector<1x8xf32>
    %22 = arith.addf %19, %21 : vector<1x8xf32>
    %23 = arith.negf %22 : vector<1x8xf32>
    %24 = math.exp %23 : vector<1x8xf32>
    %cst_17 = arith.constant 1.000000e+00 : f32
    %25 = vector.broadcast %cst_17 : f32 to vector<1x8xf32>
    %26 = arith.addf %25, %24 : vector<1x8xf32>
    %27 = arith.divf %25, %26 : vector<1x8xf32>
    %c0_18 = arith.constant 0 : index
    %c0_19 = arith.constant 0 : index
    %c0_20 = arith.constant 0 : index
    %28 = vector.load %arg8[%c0_18, %c0_19, %c0_20] : memref<1x1x8xf32, #tpu.memory_space<vmem>>, vector<1x1x8xf32>
    %29 = vector.shape_cast %28 : vector<1x1x8xf32> to vector<1x8xf32>
    %30 = vector.shape_cast %27 : vector<1x8xf32> to vector<1x1x8xf32>
    tpu.vector_store %arg8[%c0_18, %c0_19, %c0_20], %30 {strides = array<i32>} : memref<1x1x8xf32, #tpu.memory_space<vmem>>, vector<1x1x8xf32>,
    return
  }
  func.func @transform_0(%arg0: i32) -> (i32, i32) {
    %c0_i32 = arith.constant 0 : i32
    %c0_i32_0 = arith.constant 0 : i32
    return %arg0, %c0_i32 : i32, i32
  }
  func.func @transform_1(%arg0: i32) -> (i32, i32) {
    %c0_i32 = arith.constant 0 : i32
    %c0_i32_0 = arith.constant 0 : i32
    %c0_i32_1 = arith.constant 0 : i32
    return %c0_i32, %c0_i32_0 : i32, i32
  }
  func.func @transform_2(%arg0: i32) -> (i32, i32) {
    %c0_i32 = arith.constant 0 : i32
    %c0_i32_0 = arith.constant 0 : i32
    %c0_i32_1 = arith.constant 0 : i32
    return %c0_i32, %c0_i32_0 : i32, i32
  }
  func.func @transform_3(%arg0: i32) -> (i32, i32) {
    %c0_i32 = arith.constant 0 : i32
    %c0_i32_0 = arith.constant 0 : i32
    %c0_i32_1 = arith.constant 0 : i32
    return %c0_i32, %c0_i32_0 : i32, i32
  }
  func.func @transform_4(%arg0: i32) -> (i32, i32) {
    %c0_i32 = arith.constant 0 : i32
    %c0_i32_0 = arith.constant 0 : i32
    %c0_i32_1 = arith.constant 0 : i32
    return %c0_i32, %c0_i32_0 : i32, i32
  }
  func.func @transform_5(%arg0: i32) -> (i32, i32) {
    %c0_i32 = arith.constant 0 : i32
    %c0_i32_0 = arith.constant 0 : i32
    %c0_i32_1 = arith.constant 0 : i32
    return %c0_i32, %c0_i32_0 : i32, i32
  }
  func.func @transform_6(%arg0: i32) -> (i32, i32) {
    %c0_i32 = arith.constant 0 : i32
    %c0_i32_0 = arith.constant 0 : i32
    %c0_i32_1 = arith.constant 0 : i32
    return %c0_i32, %c0_i32_0 : i32, i32
  }
  func.func @transform_7(%arg0: i32) -> (i32, i32, i32) {
    %c0_i32 = arith.constant 0 : i32
    %c0_i32_0 = arith.constant 0 : i32
    %c0_i32_1 = arith.constant 0 : i32
    return %arg0, %c0_i32, %c0_i32_0 : i32, i32, i32
  }
}

</mosaic_0001>

<llo_original>
// kernel: trial_outcome_forward.1
$region0: #{trial_outcome_forward.1}
  #allocation0 [shape = 'u32[]', space=smem, size = 0x4, offset = 0x4, fixed_abs, tag = 'smem constant byte address 0x4 - core index']
  #allocation1 [shape = 'u32[144,128]{1,0:T(1,128)}', space=vmem, size = 0x12000, scoped, tag = 'internal scratch']
  #allocation2 [shape = 'f32[1,1]{1,0:T(1,128)S(1)}', space=vmem, size = 0x200, scoped, tag = 'scoped memory for trial_outcome_forward.1']
  %s0 = inlined_call_operand.vmem [shape: f32[10,32], index: 0, kind: input, shape index: {}]
  %s1 = inlined_call_operand.vmem [shape: bf16[32,128], index: 1, kind: input, shape index: {}]
  %s2 = inlined_call_operand.vmem [shape: f32[1,128], index: 2, kind: input, shape index: {}]
  %s3 = inlined_call_operand.vmem [shape: bf16[128,64], index: 3, kind: input, shape index: {}]
  %s4 = inlined_call_operand.vmem [shape: f32[1,64], index: 4, kind: input, shape index: {}]
  %s5 = inlined_call_operand.vmem [shape: bf16[1,64], index: 5, kind: input, shape index: {}]
  %s6 = inlined_call_operand.<no memory space> [shape: f32[1,1], index: 6, kind: input, shape index: {}]
  %s7 = inlined_call_operand.vmem [shape: f32[2,1,8], index: 7, kind: output, shape index: {}]
  %s8 = sld [smem:[#allocation0]]
  $region61: #{trial_outcome_forward.1} parent=0
    _
  %s10 = ssub.s32 1, %s8
  %s11 = scalar_select 0, %s10, %s8
  %v12 = vstv %s6
  %13 = vst [vmem:[#allocation2] sm:$0x1] %v12
  loop: start=0, step=1, limit=4
  $region2: #{trial_outcome_forward.1} parent=0 // loop_pre_header
    _
  $region3: #{trial_outcome_forward.1} parent=0 // loop_header
    %s15 = sphi 0, %s19
    %p16 = scmp.ge.s32.totalorder %s15, 4
    %s25 = sphi 0, %s27
    %s28 = sphi 0, %s25
    %s29 = sphi 0, %s28
    %s45 = sphi 0, %s29
    %s49 = sphi 0, %s49
    %s51 = sphi 0, %s49
    %s52 = sphi 0, %s51
    %s66 = sphi 0, %s52
    %s70 = sphi 0, %s70
    %s72 = sphi 0, %s70
    %s73 = sphi 0, %s72
    %s87 = sphi 0, %s73
    %s91 = sphi 0, %s91
    %s93 = sphi 0, %s91
    %s94 = sphi 0, %s93
    %s108 = sphi 0, %s94
    %s112 = sphi 0, %s112
    %s114 = sphi 0, %s112
    %s115 = sphi 0, %s114
    %s129 = sphi 0, %s115
    %s133 = sphi 0, %s133
    %s135 = sphi 0, %s133
    %s136 = sphi 0, %s135
    %s150 = sphi 0, %s136
    %s154 = sphi 0, %s154
    %s156 = sphi 0, %s154
    %s157 = sphi 0, %s156
    %s171 = sphi 0, %s157
    %s177 = sphi 0, %s179
    %s180 = sphi 0, %s177
    %s181 = sphi 0, %s180
    %s197 = sphi 0, %s181
  $region4: #{trial_outcome_forward.1} parent=0 // loop_header_branch
    %18 = sbr.rel (%p16) target = $region8
  $region5: #{trial_outcome_forward.1} parent=0 // loop_body
    %s20 = ssub.s32 %s15, 1
    %s21 = ssub.s32 %s15, 2
    %s22 = sadd.s32 %s15, 1
    %s23 = ssub.s32 %s15, %s22
    %p24 = scmp.eq.s32.totalorder %s23, 0
    %s26 = sadd.s32 %s25, 1
    %s27 = scalar_select %p24, %s25, %s26
    %p30 = pneg %p24
    %p31 = scmp.eq.s32.totalorder %s15, 1
    %p32 = por %p30, %p31
    %p33 = scmp.ne.s32.totalorder %s25, %s28
    %p34 = scmp.eq.s32.totalorder %s15, 0
    %p35 = por %p33, %p34
    %p36 = scmp.ne.s32.totalorder %s25, %s28
    %p37 = scmp.eq.s32.totalorder %s20, 1
    %p38 = por %p36, %p37
    %p39 = scmp.ne.s32.totalorder %s28, %s29
    %p40 = scmp.eq.s32.totalorder %s20, 0
    %p41 = por %p39, %p40
    %p42 = scmp.ne.s32.totalorder %s28, %s29
    %p43 = scmp.eq.s32.totalorder %s21, 1
    %p44 = por %p42, %p43
    %p46 = scmp.ne.s32.totalorder %s29, %s45
    %p47 = scmp.eq.s32.totalorder %s21, 0
    %p48 = por %p46, %p47
    %s50 = sadd.s32 %s49, 1
    %p53 = scmp.eq.s32.totalorder %s15, 1
    %p54 = scmp.ne.s32.totalorder %s49, %s51
    %p55 = scmp.eq.s32.totalorder %s15, 0
    %p56 = por %p54, %p55
    %p57 = scmp.ne.s32.totalorder %s49, %s51
    %p58 = scmp.eq.s32.totalorder %s20, 1
    %p59 = por %p57, %p58
    %p60 = scmp.ne.s32.totalorder %s51, %s52
    %p61 = scmp.eq.s32.totalorder %s20, 0
    %p62 = por %p60, %p61
    %p63 = scmp.ne.s32.totalorder %s51, %s52
    %p64 = scmp.eq.s32.totalorder %s21, 1
    %p65 = por %p63, %p64
    %p67 = scmp.ne.s32.totalorder %s52, %s66
    %p68 = scmp.eq.s32.totalorder %s21, 0
    %p69 = por %p67, %p68
    %s71 = sadd.s32 %s70, 1
    %p74 = scmp.eq.s32.totalorder %s15, 1
    %p75 = scmp.ne.s32.totalorder %s70, %s72
    %p76 = scmp.eq.s32.totalorder %s15, 0
    %p77 = por %p75, %p76
    %p78 = scmp.ne.s32.totalorder %s70, %s72
    %p79 = scmp.eq.s32.totalorder %s20, 1
    %p80 = por %p78, %p79
    %p81 = scmp.ne.s32.totalorder %s72, %s73
    %p82 = scmp.eq.s32.totalorder %s20, 0
    %p83 = por %p81, %p82
    %p84 = scmp.ne.s32.totalorder %s72, %s73
    %p85 = scmp.eq.s32.totalorder %s21, 1
    %p86 = por %p84, %p85
    %p88 = scmp.ne.s32.totalorder %s73, %s87
    %p89 = scmp.eq.s32.totalorder %s21, 0
    %p90 = por %p88, %p89
    %s92 = sadd.s32 %s91, 1
    %p95 = scmp.eq.s32.totalorder %s15, 1
    %p96 = scmp.ne.s32.totalorder %s91, %s93
    %p97 = scmp.eq.s32.totalorder %s15, 0
    %p98 = por %p96, %p97
    %p99 = scmp.ne.s32.totalorder %s91, %s93
    %p100 = scmp.eq.s32.totalorder %s20, 1
    %p101 = por %p99, %p100
    %p102 = scmp.ne.s32.totalorder %s93, %s94
    %p103 = scmp.eq.s32.totalorder %s20, 0
    %p104 = por %p102, %p103
    %p105 = scmp.ne.s32.totalorder %s93, %s94
    %p106 = scmp.eq.s32.totalorder %s21, 1
    %p107 = por %p105, %p106
    %p109 = scmp.ne.s32.totalorder %s94, %s108
    %p110 = scmp.eq.s32.totalorder %s21, 0
    %p111 = por %p109, %p110
    %s113 = sadd.s32 %s112, 1
    %p116 = scmp.eq.s32.totalorder %s15, 1
    %p117 = scmp.ne.s32.totalorder %s112, %s114
    %p118 = scmp.eq.s32.totalorder %s15, 0
    %p119 = por %p117, %p118
    %p120 = scmp.ne.s32.totalorder %s112, %s114
    %p121 = scmp.eq.s32.totalorder %s20, 1
    %p122 = por %p120, %p121
    %p123 = scmp.ne.s32.totalorder %s114, %s115
    %p124 = scmp.eq.s32.totalorder %s20, 0
    %p125 = por %p123, %p124
    %p126 = scmp.ne.s32.totalorder %s114, %s115
    %p127 = scmp.eq.s32.totalorder %s21, 1
    %p128 = por %p126, %p127
    %p130 = scmp.ne.s32.totalorder %s115, %s129
    %p131 = scmp.eq.s32.totalorder %s21, 0
    %p132 = por %p130, %p131
    %s134 = sadd.s32 %s133, 1
    %p137 = scmp.eq.s32.totalorder %s15, 1
    %p138 = scmp.ne.s32.totalorder %s133, %s135
    %p139 = scmp.eq.s32.totalorder %s15, 0
    %p140 = por %p138, %p139
    %p141 = scmp.ne.s32.totalorder %s133, %s135
    %p142 = scmp.eq.s32.totalorder %s20, 1
    %p143 = por %p141, %p142
    %p144 = scmp.ne.s32.totalorder %s135, %s136
    %p145 = scmp.eq.s32.totalorder %s20, 0
    %p146 = por %p144, %p145
    %p147 = scmp.ne.s32.totalorder %s135, %s136
    %p148 = scmp.eq.s32.totalorder %s21, 1
    %p149 = por %p147, %p148
    %p151 = scmp.ne.s32.totalorder %s136, %s150
    %p152 = scmp.eq.s32.totalorder %s21, 0
    %p153 = por %p151, %p152
    %s155 = sadd.s32 %s154, 1
    %p158 = scmp.eq.s32.totalorder %s15, 1
    %p159 = scmp.ne.s32.totalorder %s154, %s156
    %p160 = scmp.eq.s32.totalorder %s15, 0
    %p161 = por %p159, %p160
    %p162 = scmp.ne.s32.totalorder %s154, %s156
    %p163 = scmp.eq.s32.totalorder %s20, 1
    %p164 = por %p162, %p163
    %p165 = scmp.ne.s32.totalorder %s156, %s157
    %p166 = scmp.eq.s32.totalorder %s20, 0
    %p167 = por %p165, %p166
    %p168 = scmp.ne.s32.totalorder %s156, %s157
    %p169 = scmp.eq.s32.totalorder %s21, 1
    %p170 = por %p168, %p169
    %p172 = scmp.ne.s32.totalorder %s157, %s171
    %p173 = scmp.eq.s32.totalorder %s21, 0
    %p174 = por %p172, %p173
    %s175 = ssub.s32 %s15, %s22
    %p176 = scmp.eq.s32.totalorder %s175, 0
    %s178 = sadd.s32 %s177, 1
    %s179 = scalar_select %p176, %s177, %s178
    %p182 = pneg %p176
    %p183 = scmp.eq.s32.totalorder %s15, 1
    %p184 = por %p182, %p183
    %p185 = scmp.ne.s32.totalorder %s177, %s180
    %p186 = scmp.eq.s32.totalorder %s15, 0
    %p187 = por %p185, %p186
    %p188 = scmp.ne.s32.totalorder %s177, %s180
    %p189 = scmp.eq.s32.totalorder %s20, 1
    %p190 = por %p188, %p189
    %p191 = scmp.ne.s32.totalorder %s180, %s181
    %p192 = scmp.eq.s32.totalorder %s20, 0
    %p193 = por %p191, %p192
    %p194 = scmp.ne.s32.totalorder %s180, %s181
    %p195 = scmp.eq.s32.totalorder %s21, 1
    %p196 = por %p194, %p195
    %p198 = scmp.ne.s32.totalorder %s181, %s197
    %p199 = scmp.eq.s32.totalorder %s21, 0
    %p200 = por %p198, %p199
    %p201 = scmp.le.s32.totalorder 1, %s15
    %p202 = scmp.lt.s32.totalorder %s15, 3
    %p203 = pnand %p201, %p202
    %p204 = pneg %p203
    // Predicated region
    $region9: #{trial_outcome_forward.1} parent=5 // pred_check
      _
    $region10: #{trial_outcome_forward.1} parent=5 // pred_check_branch
      %206 = sbr.rel (%p203) target = $region12
    $region11: #{trial_outcome_forward.1} parent=5 // pred_region
      %s207 = ssub.s32 %s15, 1
      // Predicated region
      $region13: #{trial_outcome_forward.1} parent=11 // pred_check
        %p208 = pneg %p62
      $region14: #{trial_outcome_forward.1} parent=11 // pred_check_branch
        %210 = sbr.rel (%p208) target = $region16
      $region15: #{trial_outcome_forward.1} parent=11 // pred_region
        _
      $region16: #{trial_outcome_forward.1} parent=11 // pred_fallthru
        _
      // Predicated region
      $region17: #{trial_outcome_forward.1} parent=11 // pred_check
        %p211 = pneg %p83
      $region18: #{trial_outcome_forward.1} parent=11 // pred_check_branch
        %213 = sbr.rel (%p211) target = $region20
      $region19: #{trial_outcome_forward.1} parent=11 // pred_region
        _
      $region20: #{trial_outcome_forward.1} parent=11 // pred_fallthru
        _
      // Predicated region
      $region21: #{trial_outcome_forward.1} parent=11 // pred_check
        %p214 = pneg %p104
      $region22: #{trial_outcome_forward.1} parent=11 // pred_check_branch
        %216 = sbr.rel (%p214) target = $region24
      $region23: #{trial_outcome_forward.1} parent=11 // pred_region
        _
      $region24: #{trial_outcome_forward.1} parent=11 // pred_fallthru
        _
      // Predicated region
      $region25: #{trial_outcome_forward.1} parent=11 // pred_check
        %p217 = pneg %p125
      $region26: #{trial_outcome_forward.1} parent=11 // pred_check_branch
        %219 = sbr.rel (%p217) target = $region28
      $region27: #{trial_outcome_forward.1} parent=11 // pred_region
        _
      $region28: #{trial_outcome_forward.1} parent=11 // pred_fallthru
        _
      // Predicated region
      $region29: #{trial_outcome_forward.1} parent=11 // pred_check
        %p220 = pneg %p146
      $region30: #{trial_outcome_forward.1} parent=11 // pred_check_branch
        %222 = sbr.rel (%p220) target = $region32
      $region31: #{trial_outcome_forward.1} parent=11 // pred_region
        _
      $region32: #{trial_outcome_forward.1} parent=11 // pred_fallthru
        _
      // Predicated region
      $region33: #{trial_outcome_forward.1} parent=11 // pred_check
        %p223 = pneg %p167
      $region34: #{trial_outcome_forward.1} parent=11 // pred_check_branch
        %225 = sbr.rel (%p223) target = $region36
      $region35: #{trial_outcome_forward.1} parent=11 // pred_region
        _
      $region36: #{trial_outcome_forward.1} parent=11 // pred_fallthru
        _
    $region12: #{trial_outcome_forward.1} parent=5 // pred_fallthru
      _
    %p226 = scmp.lt.s32.totalorder %s15, 2
    // Predicated region
    $region37: #{trial_outcome_forward.1} parent=5 // pred_check
      %p227 = pneg %p226
    $region38: #{trial_outcome_forward.1} parent=5 // pred_check_branch
      %229 = sbr.rel (%p227) target = $region40
    $region39: #{trial_outcome_forward.1} parent=5 // pred_region
      // Predicated region
      $region41: #{trial_outcome_forward.1} parent=39 // pred_check
        %p230 = pneg %p35
      $region42: #{trial_outcome_forward.1} parent=39 // pred_check_branch
        %232 = sbr.rel (%p230) target = $region44
      $region43: #{trial_outcome_forward.1} parent=39 // pred_region
        %p233 = scmp.lt.s32.totalorder %s15, 1
        %s234 = scalar_select %p233, %s15, 1
        %s235 = smul.addr %s234, 8
        %s236 = scalar_lea.vmem %s0, %s235
      $region44: #{trial_outcome_forward.1} parent=39 // pred_fallthru
        _
    $region40: #{trial_outcome_forward.1} parent=5 // pred_fallthru
      _
    %p237 = scmp.le.s32.totalorder 1, %s15
    %p238 = scmp.lt.s32.totalorder %s15, 3
    %p239 = pnand %p237, %p238
    %p240 = pneg %p239
    // Predicated region
    $region45: #{trial_outcome_forward.1} parent=5 // pred_check
      _
    $region46: #{trial_outcome_forward.1} parent=5 // pred_check_branch
      %242 = sbr.rel (%p239) target = $region48
    $region47: #{trial_outcome_forward.1} parent=5 // pred_region
      %s243 = ssub.s32 %s15, 1
      %p244 = scmp.lt.s32.totalorder %s20, 1
      %s245 = scalar_select %p244, %s20, 1
      %s246 = smul.addr %s245, 8
      %s247 = scalar_lea.vmem %s0, %s246
      %p248 = pneg %p41
      %p249 = pneg %p38
      %p250 = pneg %p62
      %p251 = pneg %p59
      %p252 = pneg %p83
      %p253 = pneg %p80
      %p254 = pneg %p104
      %p255 = pneg %p101
      %p256 = pneg %p125
      %p257 = pneg %p122
      %p258 = pneg %p146
      %p259 = pneg %p143
      %p260 = pneg %p167
      %p261 = pneg %p164
      %p262 = pneg %p193
      %p263 = pneg %p190
      %p264 = scmp.lt.s32.totalorder %s20, 1
      %s265 = scalar_select %p264, %s20, 1
      %s266 = scalar_lea.vmem %s7, %s265
      %p267 = scmp.lt.s32.totalorder %s20, 1
      %s268 = scalar_select %p267, %s20, 1
      %s269 = smul.addr %s268, 8
      %s270 = scalar_lea.vmem %s0, %s269
      %p271 = scmp.lt.s32.totalorder %s20, 1
      %s272 = scalar_select %p271, %s20, 1
      %s273 = scalar_lea.vmem %s7, %s272
      %v275 = vld [vmem:[%s270] sm:$0xff]
      %v276 = vpack.c.bf16 %v275, %v275
      %v277 = vld [vmem:[%s1] sm:$0xf]
      %v278 = vld [vmem:[%s1 + $0x4] sm:$0xf]
      %v279 = vld [vmem:[%s1 + $0x8] sm:$0xf]
      %v280 = vld [vmem:[%s1 + $0xc] sm:$0xf]
      %v281 = vld [vmem:[%s2] sm:$0x1]
      %v283 = vlaneseq
      %v284 = vshrl.u32 %v283, 7
      %v285 = vsub.s32 0, %v284
      %v286 = vrot.slane %v281, %v285
      %v292 = vunpack.c.l.b16 %v277
      %v293 = vunpack.c.l.b16 %v278
      %v294 = vunpack.c.l.b16 %v279
      %v295 = vunpack.c.l.b16 %v280
      %v296 = vpack.c.b16 %v293, %v292
      %v297 = vpack.c.b16 %v295, %v294
      %vm300 = vcmask 261120
      %v302 = vsel %vm300, %v276, 0
      %304 = vmatprep.subr.bf16.mxu0 0
      %305 = vmatpush1.bf16.msra.mxu0 %v296
      %306 = vmatprep.subr.bf16.mxu0 0
      %307 = vmatpush1.bf16.msra.mxu0 %v297
      %308 = vmatprep.subr.bf16.mxu0 0
      %309 = vmatpush1.bf16.msra.mxu0 0
      %310 = vmatprep.subr.bf16.mxu0 0
      %311 = vmatpush1.bf16.msra.mxu0 0
      %312 = vmatprep.subr.bf16.mxu0 0
      %313 = vmatpush1.bf16.msra.mxu0 0
      %314 = vmatprep.subr.bf16.mxu0 0
      %315 = vmatpush1.bf16.msra.mxu0 0
      %316 = vmatprep.subr.bf16.mxu0 0
      %317 = vmatpush1.bf16.msra.mxu0 0
      %318 = vmatprep.subr.bf16.mxu0 0
      %319 = vmatpush1.bf16.msra.mxu0 0
      %320 = vmatprep.subr.bf16.mxu0 0
      %321 = vmatpush1.bf16.msra.mxu0 0
      %322 = vmatprep.subr.bf16.mxu0 0
      %323 = vmatpush1.bf16.msra.mxu0 0
      %324 = vmatprep.subr.bf16.mxu0 0
      %325 = vmatpush1.bf16.msra.mxu0 0
      %326 = vmatprep.subr.bf16.mxu0 0
      %327 = vmatpush1.bf16.msra.mxu0 0
      %328 = vmatprep.subr.bf16.mxu0 0
      %329 = vmatpush1.bf16.msra.mxu0 0
      %330 = vmatprep.subr.bf16.mxu0 0
      %331 = vmatpush1.bf16.msra.mxu0 0
      %332 = vmatprep.subr.bf16.mxu0 0
      %333 = vmatpush1.bf16.msra.mxu0 0
      %334 = vmatprep.subr.bf16.mxu0 0
      %335 = vmatpush1.bf16.msra.mxu0 0
      %336 = vmatprep.mubr.bf16.mxu0 0
      %337 = vmatmul.mubr.bf16.gmra.mrb[0].mxu0 %v302
      %v338 = vpop.f32.mrb[0].mxu0
      %v339 = vadd.f32 %v286, %v338
      %v340 = vpop.f32.mrb[0].mxu0
      %v341 = vpop.f32.mrb[0].mxu0
      %v342 = vpop.f32.mrb[0].mxu0
      %343 = vdwg.mxu0
      %v344 = vmax.f32 %v339, 0.0
      %v345 = vpack.c.bf16 %v344, %v344
      %v346 = vld [vmem:[%s3] sm:$0xf]
      %v347 = vld [vmem:[%s3 + $0x4] sm:$0xf]
      %v348 = vld [vmem:[%s3 + $0x8] sm:$0xf]
      %v349 = vld [vmem:[%s3 + $0xc] sm:$0xf]
      %v350 = vld [vmem:[%s3 + $0x10] sm:$0xf]
      %v351 = vld [vmem:[%s3 + $0x14] sm:$0xf]
      %v352 = vld [vmem:[%s3 + $0x18] sm:$0xf]
      %v353 = vld [vmem:[%s3 + $0x1c] sm:$0xf]
      %v354 = vld [vmem:[%s3 + $0x20] sm:$0xf]
      %v355 = vld [vmem:[%s3 + $0x24] sm:$0xf]
      %v356 = vld [vmem:[%s3 + $0x28] sm:$0xf]
      %v357 = vld [vmem:[%s3 + $0x2c] sm:$0xf]
      %v358 = vld [vmem:[%s3 + $0x30] sm:$0xf]
      %v359 = vld [vmem:[%s3 + $0x34] sm:$0xf]
      %v360 = vld [vmem:[%s3 + $0x38] sm:$0xf]
      %v361 = vld [vmem:[%s3 + $0x3c] sm:$0xf]
      %v362 = vld [vmem:[%s4] sm:$0x1]
      %v364 = vlaneseq
      %v365 = vshrl.u32 %v364, 7
      %v366 = vsub.s32 0, %v365
      %v367 = vrot.slane %v362, %v366
      %v385 = vunpack.c.l.b16 %v346
      %v386 = vunpack.c.l.b16 %v347
      %v387 = vunpack.c.l.b16 %v348
      %v388 = vunpack.c.l.b16 %v349
      %v389 = vunpack.c.l.b16 %v350
      %v390 = vunpack.c.l.b16 %v351
      %v391 = vunpack.c.l.b16 %v352
      %v392 = vunpack.c.l.b16 %v353
      %v393 = vunpack.c.l.b16 %v354
      %v394 = vunpack.c.l.b16 %v355
      %v395 = vunpack.c.l.b16 %v356
      %v396 = vunpack.c.l.b16 %v357
      %v397 = vunpack.c.l.b16 %v358
      %v398 = vunpack.c.l.b16 %v359
      %v399 = vunpack.c.l.b16 %v360
      %v400 = vunpack.c.l.b16 %v361
      %v401 = vpack.c.b16 %v386, %v385
      %v402 = vpack.c.b16 %v388, %v387
      %v403 = vpack.c.b16 %v390, %v389
      %v404 = vpack.c.b16 %v392, %v391
      %v405 = vpack.c.b16 %v394, %v393
      %v406 = vpack.c.b16 %v396, %v395
      %v407 = vpack.c.b16 %v398, %v397
      %v408 = vpack.c.b16 %v400, %v399
      %417 = vmatprep.subr.bf16.mxu0 0
      %418 = vmatpush1.bf16.msra.mxu0 %v401
      %419 = vmatprep.subr.bf16.mxu0 0
      %420 = vmatpush1.bf16.msra.mxu0 %v402
      %421 = vmatprep.subr.bf16.mxu0 0
      %422 = vmatpush1.bf16.msra.mxu0 %v403
      %423 = vmatprep.subr.bf16.mxu0 0
      %424 = vmatpush1.bf16.msra.mxu0 %v404
      %425 = vmatprep.subr.bf16.mxu0 0
      %426 = vmatpush1.bf16.msra.mxu0 %v405
      %427 = vmatprep.subr.bf16.mxu0 0
      %428 = vmatpush1.bf16.msra.mxu0 %v406
      %429 = vmatprep.subr.bf16.mxu0 0
      %430 = vmatpush1.bf16.msra.mxu0 %v407
      %431 = vmatprep.subr.bf16.mxu0 0
      %432 = vmatpush1.bf16.msra.mxu0 %v408
      %433 = vmatprep.subr.bf16.mxu0 0
      %434 = vmatpush1.bf16.msra.mxu0 0
      %435 = vmatprep.subr.bf16.mxu0 0
      %436 = vmatpush1.bf16.msra.mxu0 0
      %437 = vmatprep.subr.bf16.mxu0 0
      %438 = vmatpush1.bf16.msra.mxu0 0
      %439 = vmatprep.subr.bf16.mxu0 0
      %440 = vmatpush1.bf16.msra.mxu0 0
      %441 = vmatprep.subr.bf16.mxu0 0
      %442 = vmatpush1.bf16.msra.mxu0 0
      %443 = vmatprep.subr.bf16.mxu0 0
      %444 = vmatpush1.bf16.msra.mxu0 0
      %445 = vmatprep.subr.bf16.mxu0 0
      %446 = vmatpush1.bf16.msra.mxu0 0
      %447 = vmatprep.subr.bf16.mxu0 0
      %448 = vmatpush1.bf16.msra.mxu0 0
      %449 = vmatprep.mubr.bf16.mxu0 0
      %450 = vmatmul.mubr.bf16.gmra.mrb[0].mxu0 %v345
      %v451 = vpop.f32.mrb[0].mxu0
      %v452 = vadd.f32 %v367, %v451
      %v453 = vpop.f32.mrb[0].mxu0
      %v454 = vpop.f32.mrb[0].mxu0
      %v455 = vpop.f32.mrb[0].mxu0
      %456 = vdwg.mxu0
      %v457 = vmax.f32 %v452, 0.0
      %v458 = vld [vmem:[%s5] sm:$0x1]
      %v459 = vpack.c.bf16 %v457, %v457
      %v460 = vld [vmem:[#allocation2] sm:$0x1]
      %462 = vset.pattern.permute.xlu0 0
      %463 = vperm.xlu0 %462, %v460
      %v464 = vpop.permute.xlu0 %463
      %v466 = vlaneseq
      %v467 = vshrl.u32 %v466, 7
      %v468 = vsub.s32 0, %v467
      %v469 = vrot.slane %v464, %v468
      %vm470 = vcmask 523264
      %v472 = vsel %vm470, %v458, 0
      %v475 = vsel %vm470, %v459, 0
      %477 = vmatprep.subr.bf16.mxu0 0
      %478 = vmatpush1.bf16.xpose.msra.mxu0 %v475
      %479 = vmatprep.subr.bf16.mxu0 0
      %480 = vmatpush1.bf16.xpose.msra.mxu0 0
      %481 = vmatprep.subr.bf16.mxu0 0
      %482 = vmatpush1.bf16.xpose.msra.mxu0 0
      %483 = vmatprep.subr.bf16.mxu0 0
      %484 = vmatpush1.bf16.xpose.msra.mxu0 0
      %485 = vmatprep.subr.bf16.mxu0 0
      %486 = vmatpush1.bf16.xpose.msra.mxu0 0
      %487 = vmatprep.subr.bf16.mxu0 0
      %488 = vmatpush1.bf16.xpose.msra.mxu0 0
      %489 = vmatprep.subr.bf16.mxu0 0
      %490 = vmatpush1.bf16.xpose.msra.mxu0 0
      %491 = vmatprep.subr.bf16.mxu0 0
      %492 = vmatpush1.bf16.xpose.msra.mxu0 0
      %493 = vmatprep.subr.bf16.mxu0 0
      %494 = vmatpush1.bf16.xpose.msra.mxu0 0
      %495 = vmatprep.subr.bf16.mxu0 0
      %496 = vmatpush1.bf16.xpose.msra.mxu0 0
      %497 = vmatprep.subr.bf16.mxu0 0
      %498 = vmatpush1.bf16.xpose.msra.mxu0 0
      %499 = vmatprep.subr.bf16.mxu0 0
      %500 = vmatpush1.bf16.xpose.msra.mxu0 0
      %501 = vmatprep.subr.bf16.mxu0 0
      %502 = vmatpush1.bf16.xpose.msra.mxu0 0
      %503 = vmatprep.subr.bf16.mxu0 0
      %504 = vmatpush1.bf16.xpose.msra.mxu0 0
      %505 = vmatprep.subr.bf16.mxu0 0
      %506 = vmatpush1.bf16.xpose.msra.mxu0 0
      %507 = vmatprep.subr.bf16.mxu0 0
      %508 = vmatpush1.bf16.xpose.msra.mxu0 0
      %509 = vmatprep.mubr.bf16.mxu0 0
      %510 = vmatmul.mubr.bf16.gmra.mrb[0].mxu0 %v472
      %v511 = vpop.f32.mrb[0].mxu0
      %v512 = vadd.f32 %v469, %v511
      %v513 = vpop.f32.mrb[0].mxu0
      %v514 = vpop.f32.mrb[0].mxu0
      %v515 = vpop.f32.mrb[0].mxu0
      %516 = vdwg.mxu0
      %v517 = vxor.u32 %v512, 2147483648
      %v518 = vmul.f32 %v517, 1.442695
      %v519 = vpow.pop %v518
      %v520 = vadd.f32 %v519, 1.0
      %v521 = vrcp.pop %v520
      %v522 = vmul.f32 1.0, %v521
      %vm523 = vcmask 57344
      %524 = vst.msk [vmem:[%s273] sm:$0x1] %vm523, %v522
      %p525 = scmp.lt.s32.totalorder %s20, 1
      %s526 = scalar_select %p525, %s20, 1
      %s527 = scalar_lea.vmem %s7, %s526
      // Predicated region
      $region49: #{trial_outcome_forward.1} parent=47 // pred_check
        %p528 = pneg %p190
      $region50: #{trial_outcome_forward.1} parent=47 // pred_check_branch
        %530 = sbr.rel (%p528) target = $region52
      $region51: #{trial_outcome_forward.1} parent=47 // pred_region
        _
      $region52: #{trial_outcome_forward.1} parent=47 // pred_fallthru
        _
    $region48: #{trial_outcome_forward.1} parent=5 // pred_fallthru
      _
    %p531 = scmp.le.s32.totalorder 2, %s15
    // Predicated region
    $region53: #{trial_outcome_forward.1} parent=5 // pred_check
      %p532 = pneg %p531
    $region54: #{trial_outcome_forward.1} parent=5 // pred_check_branch
      %534 = sbr.rel (%p532) target = $region56
    $region55: #{trial_outcome_forward.1} parent=5 // pred_region
      %s535 = ssub.s32 %s15, 2
      // Predicated region
      $region57: #{trial_outcome_forward.1} parent=55 // pred_check
        %p536 = pneg %p196
      $region58: #{trial_outcome_forward.1} parent=55 // pred_check_branch
        %538 = sbr.rel (%p536) target = $region60
      $region59: #{trial_outcome_forward.1} parent=55 // pred_region
        %p539 = scmp.lt.s32.totalorder %s21, 1
        %s540 = scalar_select %p539, %s21, 1
        %s541 = scalar_lea.vmem %s7, %s540
      $region60: #{trial_outcome_forward.1} parent=55 // pred_fallthru
        _
    $region56: #{trial_outcome_forward.1} parent=5 // pred_fallthru
      _
  $region6: #{trial_outcome_forward.1} parent=0 // loop_footer
    %s19 = sadd.s32 1, %s15
  $region7: #{trial_outcome_forward.1} parent=0 // loop_footer_branch
    %14 = sbr.rel target = $region3
  $region8: #{trial_outcome_forward.1} parent=0 // loop_exit
    _

</llo_original>
